<compile_context>
chip_gen: v6e
topology: v6e:2x2x1
jax: 0.10.0
libtpu: 0.0.40
codegen_flags: <defaults>
</compile_context>

<pallas_src>
import functools
import math

import jax
import jax.numpy as jnp
from jax.experimental import pallas as pl
from jax.experimental.pallas import tpu as pltpu


# ~4 MiB f32 output block; double-buffered -> ~8 MiB, under every generation's
# default scoped-VMEM limit (v5e 16 MiB, v6e/v7x 32 MiB).  Measured data shows
# >=512 KiB blocks are already ~85% of the HBM store roofline, so no need to go
# bigger or deeper than the default Buffered(2).
_TARGET_BLOCK_BYTES = 4 * 1024 * 1024
# Cap on the lane-dense repeat-unit height (rows of 128 lanes); 64 rows = 32 KiB
# per resident table.  Dims whose unit would be taller fall back to the dense path.
_MAX_REP_ROWS = 64


def _num_tensorcores():
    """Best-effort TensorCores-per-chip (1 on v5e/v6e, 2 on v7x); default 1."""
    try:
        info = pltpu.get_tpu_info()
        for attr in ("num_cores", "num_tensorcores", "tensorcore_count",
                     "cores_per_chip", "num_cores_per_chip", "core_count"):
            v = getattr(info, attr, None)
            if isinstance(v, int) and 1 <= v <= 4:
                return v
    except Exception:
        pass
    try:
        v = getattr(jax.local_devices()[0], "num_cores", None)
        if isinstance(v, int) and 1 <= v <= 4:
            return v
    except Exception:
        pass
    return 1


def _pick_tile(total, item_bytes, align, num_cores):
    """Largest tile (multiple of `align`) under the ~4 MiB block budget.

    1-TC chips (v5e/v6e): emit a single block whenever the table fits -- the grid
    is a serial loop there and extra blocks are pure per-step overhead.
    Multi-TC chips (v7x): split into near-equal per-core shares so that
    dimension_semantics=("parallel",) shards the grid with balanced halves.
    """
    budget = max(align, (_TARGET_BLOCK_BYTES // item_bytes) // align * align)
    if num_cores > 1:
        per_core = -(-total // num_cores)           # ceil(total / num_cores)
        per_core = -(-per_core // align) * align    # round up to alignment
        tile = min(budget, per_core)
    else:
        tile = budget
    if tile >= total:
        tile = total                                # single full block
    return max(tile, 1)


def _rotary_flat_kernel(offset_ref, rep_pos_ref, rep_inv_ref, out_ref, *,
                        seq_per_unit, block_units):
    """Lane-dense path: out_ref is a (bU, R, 128) row-major view of (seq, dim).

    rep_pos_ref : (1, R, 128) f32 -- seq offset of each element within one unit
    rep_inv_ref : (1, R, 128) f32 -- inv_freq value of each element within one unit
    offset_ref  : (1,) int32 in SMEM (scalar prefetch)
    """
    bU, R, _ = out_ref.shape
    u0 = pl.program_id(0) * block_units
    base = (u0 * seq_per_unit + offset_ref[0]).astype(jnp.float32)
    unit = jax.lax.broadcasted_iota(jnp.int32, (bU, R, 128), 0).astype(jnp.float32)
    # Positions are exact integers in f32 (< 2^24), so this matches the reference
    # (n + offset) * inv_freq bit-for-bit.
    pos = unit * jnp.float32(seq_per_unit) + (rep_pos_ref[...] + base)
    out_ref[...] = pos * rep_inv_ref[...]


def _rotary_dense_kernel(offset_ref, inv2_ref, out_ref, *, tile_s):
    """Generic fallback: out_ref is (S, dim), inv2_ref is (1, dim) = cat(f, f)."""
    S = out_ref.shape[0]
    s0 = pl.program_id(0) * tile_s
    base = (s0 + offset_ref[0]).astype(jnp.float32)
    seq = jax.lax.broadcasted_iota(jnp.int32, (S, 1), 0).astype(jnp.float32) + base
    out_ref[...] = seq * inv2_ref[...]               # (S,1)*(1,D) -> (S,D)


class RotaryEmbedding:
    """JAX/Pallas port of megatron RotaryEmbedding."""

    def __init__(self, dim, max_position_embeddings=2048, base=10000.0):
        assert dim % 2 == 0, "rotary dim must be even"
        self.dim = dim
        self.max_position_embeddings = max_position_embeddings
        self.base = base
        self._num_cores = _num_tensorcores()

        # inv_freq = 1 / base ** (arange(0, dim, 2) / dim)
        exponents = jnp.arange(0, dim, 2, dtype=jnp.float32) / dim
        self.inv_freq = (1.0 / (base ** exponents)).astype(jnp.float32)   # (dim//2,)
        inv_full = jnp.concatenate([self.inv_freq, self.inv_freq])        # (dim,)
        self.inv_freq2 = inv_full.reshape(1, dim)                         # dense-path const

        # Lane-dense repeat unit: R rows of 128 lanes that are both sublane
        # aligned (R % 8 == 0) and a whole number of seq positions.
        period = math.lcm(dim, 128) // 128
        rep_rows = math.lcm(period, 8)
        if rep_rows <= _MAX_REP_ROWS:
            self.rep_rows = rep_rows
            self.seq_per_unit = rep_rows * 128 // dim
            flat_idx = jnp.arange(rep_rows * 128, dtype=jnp.int32).reshape(1, rep_rows, 128)
            self.rep_pos = (flat_idx // dim).astype(jnp.float32)           # (1,R,128)
            self.rep_inv = inv_full[flat_idx % dim].astype(jnp.float32)    # (1,R,128)
        else:
            self.rep_rows = None
            self.seq_per_unit = None
            self.rep_pos = None
            self.rep_inv = None

    def __call__(self, max_seq_len, offset=0):
        return self._get_freq(max_seq_len, offset)

    def _get_freq(self, max_seq_len, offset=0):
        offset_arr = jnp.asarray(offset, dtype=jnp.int32).reshape(1)
        use_flat = (self.rep_rows is not None
                    and (max_seq_len * self.dim) % (self.rep_rows * 128) == 0)
        if use_flat:
            emb = self._flat_call(max_seq_len, offset_arr)
        else:
            emb = self._dense_call(max_seq_len, offset_arr)
        # 'n d -> n 1 1 d' (same row-major memory; free reshape).
        return emb.reshape(max_seq_len, 1, 1, self.dim)

    # ---- lane-dense path: output slab is (units, R, 128) ----
    def _flat_call(self, max_seq_len, offset_arr):
        R = self.rep_rows
        spu = self.seq_per_unit
        U = max_seq_len // spu
        block_units = _pick_tile(U, R * 128 * 4, 1, self._num_cores)
        grid = (pl.cdiv(U, block_units),)
        kernel = functools.partial(_rotary_flat_kernel,
                                   seq_per_unit=spu, block_units=block_units)
        return pl.pallas_call(
            kernel,
            out_shape=jax.ShapeDtypeStruct((U, R, 128), jnp.float32),
            grid_spec=pltpu.PrefetchScalarGridSpec(
                num_scalar_prefetch=1,
                grid=grid,
                in_specs=[
                    pl.BlockSpec((1, R, 128), lambda i, off: (0, 0, 0)),   # rep_pos
                    pl.BlockSpec((1, R, 128), lambda i, off: (0, 0, 0)),   # rep_inv
                ],
                out_specs=pl.BlockSpec((block_units, R, 128),
                                       lambda i, off: (i, 0, 0)),
            ),
            # TODO(synk): on v7x, pltpu.CORE_PARALLEL (or pl.core_map) could be
            # used here for explicit per-TensorCore sharding of the grid axis.
            compiler_params=pltpu.CompilerParams(
                dimension_semantics=("parallel",)),
        )(offset_arr, self.rep_pos, self.rep_inv)

    # ---- generic fallback: output is (seq, dim) ----
    def _dense_call(self, max_seq_len, offset_arr):
        dim = self.dim
        tile_s = _pick_tile(max_seq_len, dim * 4, 8, self._num_cores)
        grid = (pl.cdiv(max_seq_len, tile_s),)
        kernel = functools.partial(_rotary_dense_kernel, tile_s=tile_s)
        return pl.pallas_call(
            kernel,
            out_shape=jax.ShapeDtypeStruct((max_seq_len, dim), jnp.float32),
            grid_spec=pltpu.PrefetchScalarGridSpec(
                num_scalar_prefetch=1,
                grid=grid,
                in_specs=[pl.BlockSpec((1, dim), lambda i, off: (0, 0))],
                out_specs=pl.BlockSpec((tile_s, dim), lambda i, off: (i, 0)),
            ),
            compiler_params=pltpu.CompilerParams(
                dimension_semantics=("parallel",)),
        )(offset_arr, self.inv_freq2)


def _reference(dim, base, max_seq_len, offset=0):
    inv_freq = 1.0 / (base ** (jnp.arange(0, dim, 2, dtype=jnp.float32) / dim))
    seq = jnp.arange(max_seq_len, dtype=jnp.float32) + offset
    freqs = jnp.einsum("i,j->ij", seq, inv_freq)
    emb = jnp.concatenate([freqs, freqs], axis=-1)
    return emb.reshape(max_seq_len, 1, 1, dim)


if __name__ == "__main__":
    # Deterministic setup (module has no trainable params; buffers derive from
    # dim/base).  PRNGKey kept per spec but unused for the buffer itself.
    _ = jax.random.PRNGKey(0)

    def check(dim, seq, offset, num_cores=None, tag=""):
        rope = RotaryEmbedding(dim=dim, max_position_embeddings=2048, base=10000.0)
        if num_cores is not None:
            rope._num_cores = num_cores   # force a multi-block grid for testing
        out = jax.block_until_ready(rope(seq, offset=offset))
        ref = _reference(dim, 10000.0, seq, offset)
        assert out.shape == (seq, 1, 1, dim), (tag, out.shape)
        assert out.dtype == jnp.float32, (tag, out.dtype)
        assert jnp.allclose(out, ref, rtol=1e-6, atol=1e-5), f"mismatch: {tag}"

    # 1) tiny table -> dense fallback, single full block.
    check(32, 8, 0, tag="dense tiny")
    # 2) dim | 128 lane-dense path, single block, nonzero offset.
    check(64, 512, 5, tag="flat dim|128")
    # 3) generalized lane-dense path (dim=96 -> 24x128 repeat unit).
    check(96, 128, 3, tag="flat dim=96")
    # 4) dense fallback with ragged seq length.
    check(96, 40, 3, tag="dense ragged")
    # 5) forced 2-way grid split (emulates v7x core sharding), ragged last block.
    check(64, 80, 7, num_cores=2, tag="flat 2-core ragged")
    # 6) forced 2-way split on the dense fallback path.
    check(96, 40, 2, num_cores=2, tag="dense 2-core split")

    print("KERNEL_OK")
</pallas_src>

<mosaic_0001>
module attributes {stable_mosaic.version = 11 : i64} {
  func.func @_rotary_dense_kernel(%arg0: i32, %arg1: memref<1xi32, #tpu.memory_space<smem>>, %arg2: memref<1x32xf32, #tpu.memory_space<vmem>>, %arg3: memref<8x32xf32, #tpu.memory_space<vmem>>) attributes {dimension_semantics = [#tpu.dimension_semantics<parallel>], iteration_bounds = array<i64: 1>, scalar_prefetch = 1 : i64, scratch_operands = 0 : i64, tpu.core_type = #tpu.core_type<tc>, window_params = [{pipeline_mode = #tpu.pipeline_mode<synchronous>, transform_indices = @transform_0, window_bounds = array<i64: 1, 32>}, {transform_indices = @transform_1, window_bounds = array<i64: 8, 32>}]} {
    %c8_i32 = arith.constant 8 : i32
    %0 = arith.muli %arg0, %c8_i32 : i32
    %c0 = arith.constant 0 : index
    %1 = memref.load %arg1[%c0] : memref<1xi32, #tpu.memory_space<smem>>
    %2 = arith.addi %0, %1 : i32
    %3 = arith.sitofp %2 : i32 to f32
    %4 = tpu.iota {dimensions = array<i32: 0>} : vector<8x1xi32>
    %5 = arith.sitofp %4 : vector<8x1xi32> to vector<8x1xf32>
    %6 = vector.broadcast %3 : f32 to vector<8x1xf32>
    %7 = arith.addf %5, %6 : vector<8x1xf32>
    %c0_0 = arith.constant 0 : index
    %c0_1 = arith.constant 0 : index
    %8 = vector.load %arg2[%c0_0, %c0_1] : memref<1x32xf32, #tpu.memory_space<vmem>>, vector<1x32xf32>
    %9 = vector.broadcast %7 : vector<8x1xf32> to vector<8x32xf32>
    %10 = vector.broadcast %8 : vector<1x32xf32> to vector<8x32xf32>
    %11 = arith.mulf %9, %10 : vector<8x32xf32>
    %c0_2 = arith.constant 0 : index
    %c0_3 = arith.constant 0 : index
    %12 = vector.load %arg3[%c0_2, %c0_3] : memref<8x32xf32, #tpu.memory_space<vmem>>, vector<8x32xf32>
    tpu.vector_store %arg3[%c0_2, %c0_3], %11 {strides = array<i32>} : memref<8x32xf32, #tpu.memory_space<vmem>>, vector<8x32xf32>,
    return
  }
  func.func @transform_0(%arg0: i32, %arg1: memref<1xi32, #tpu.memory_space<smem>>) -> (i32, i32) {
    %c0_i32 = arith.constant 0 : i32
    %c0_i32_0 = arith.constant 0 : i32
    %c0_i32_1 = arith.constant 0 : i32
    return %c0_i32, %c0_i32_0 : i32, i32
  }
  func.func @transform_1(%arg0: i32, %arg1: memref<1xi32, #tpu.memory_space<smem>>) -> (i32, i32) {
    %c0_i32 = arith.constant 0 : i32
    %c0_i32_0 = arith.constant 0 : i32
    return %arg0, %c0_i32 : i32, i32
  }
}

</mosaic_0001>

<llo_original>
// kernel: tpu_custom_call.1
$region0: #{tpu_custom_call.1}
  #allocation0 [shape = 'u32[]', space=smem, size = 0x4, offset = 0x4, fixed_abs, tag = 'smem constant byte address 0x4 - core index']
  #allocation1 [shape = 'u32[144,128]{1,0:T(1,128)}', space=vmem, size = 0x12000, scoped, tag = 'internal scratch']
  #allocation2 [shape = 's32[1]{0}', space=sflag, size = 0x4, scoped, tag = 'scoped memory for tpu_custom_call.1']
  #allocation3 [shape = 's32[1]{0:T(128)S(6)}', space=smem, size = 0x200, scoped, tag = 'prefetched SMEM operand 0']
  %s0 = inlined_call_operand.<no memory space> [shape: s32[1], index: 0, kind: input, shape index: {}]
  %s1 = inlined_call_operand.vmem [shape: f32[1,32], index: 1, kind: input, shape index: {}]
  %s2 = inlined_call_operand.hbm [shape: f32[8,32], index: 2, kind: output, shape index: {}]
  %s3 = sld [smem:[#allocation0]]
  $region14: #{tpu_custom_call.1} parent=0
    _
  %s5 = ssub.s32 1, %s3
  %s6 = scalar_select 0, %s5, %s3
  %7 = sst [smem:[#allocation3]] %s0
  $region1: #{tpu_custom_call.1} parent=0
    #allocation4 [shape = 'u8[4096]{0}', space=vmem, size = 0x1000, scoped, tag = 'output window, operand 0, single buffered']
    #allocation5 [shape = 's32[1]{0}', space=sflag, size = 0x4, scoped, tag = 'scoped memory for tpu_custom_call.1']
    %8 = vsyncpa [#allocation5], 0
    // Predicated region
    $region2: #{tpu_custom_call.1} parent=1 // pred_check
      _
    $region3: #{tpu_custom_call.1} parent=1 // pred_check_branch
      %10 = sbr.rel (0) target = $region5
    $region4: #{tpu_custom_call.1} parent=1 // pred_region
      _
    $region5: #{tpu_custom_call.1} parent=1 // pred_fallthru
      _
    %s11 = smul.u32 0, 8
    %s12 = sld [smem:[#allocation3]]
    %s13 = sadd.s32 %s11, %s12
    %s14 = scvt.s32.f32 %s13
    %v15 = vlaneseq
    %v16 = vshrl.u32 %v15, 7
    %v17 = vcvt.s32.f32 %v16
    %v18 = vstv %s14
    %v19 = vadd.f32 %v17, %v18
    %v20 = vld [vmem:[%s1] sm:$0x1]
    %v22 = vlaneseq
    %v23 = vshrl.u32 %v22, 7
    %v24 = vsub.s32 0, %v23
    %v25 = vrot.slane %v20, %v24
    %v27 = vmul.f32 %v19, %v25
    %vm28 = vcmask 261120
    %29 = vst.msk [vmem:[#allocation4] sm:$0xff] %vm28, %v27
    // Predicated region
    $region6: #{tpu_custom_call.1} parent=1 // pred_check
      _
    $region7: #{tpu_custom_call.1} parent=1 // pred_check_branch
      %31 = sbr.rel (0) target = $region9
    $region8: #{tpu_custom_call.1} parent=1 // pred_region
      %s33 = ssub.s32 128, 128
      %34 = vsyncadd [#allocation5], %s33
      %s36 = sshll.u32 [#allocation4], 4
      %s37 = int_to_ptr.vmem [resolvable:$true] %s36
      %39 = dma.vmem_to_hbm [thread:$0]  %s37, 128, %s2, [#allocation5]
    $region9: #{tpu_custom_call.1} parent=1 // pred_fallthru
      _
    // Predicated region
    $region10: #{tpu_custom_call.1} parent=1 // pred_check
      _
    $region11: #{tpu_custom_call.1} parent=1 // pred_check_branch
      %41 = sbr.rel (0) target = $region13
    $region12: #{tpu_custom_call.1} parent=1 // pred_region
      %42 = dma.done [#allocation5], 128
    $region13: #{tpu_custom_call.1} parent=1 // pred_fallthru
      _
    %43 = vsyncpa [#allocation5], 1

</llo_original>
